<compile_context>
chip_gen: v6e
topology: v6e:2x2x1
jax: 0.10.0
libtpu: 0.0.40
codegen_flags: <defaults>
</compile_context>

<pallas_src>
import functools

import jax
import jax.numpy as jnp
from jax.experimental import pallas as pl
from jax.experimental.pallas import tpu as pltpu


def _round_up(x, m):
    return ((x + m - 1) // m) * m


def _dpn_loss_kernel(*refs, margin, use_ce, pregather, cent_bf16,
                     b_total, tb, n_inner):
    # Ref order (matches the wrapper):
    #   pregather: code, cent_sel, [logits, true_logit], out
    #   onehot   : labels, code, centroids, [logits], out
    if pregather:
        if use_ce:
            code_ref, cent_sel_ref, logits_ref, tl_ref, out_ref = refs
        else:
            code_ref, cent_sel_ref, out_ref = refs
    else:
        if use_ce:
            labels_ref, code_ref, cent_ref, logits_ref, out_ref = refs
        else:
            labels_ref, code_ref, cent_ref, out_ref = refs

    c = pl.program_id(0)      # (pseudo-)core index: parallel axis
    j = pl.program_id(1)      # batch-tile index within this core: arbitrary axis

    # --- init this core's resident partial-sum block ---
    @pl.when(j == 0)
    def _init():
        out_ref[...] = jnp.zeros_like(out_ref)

    code = code_ref[...].astype(jnp.float32)                     # (tb, nbit)

    one_hot_bool = None
    if pregather:
        cent_sel = cent_sel_ref[...].astype(jnp.float32)         # (tb, nbit)
    else:
        lbl = labels_ref[...]                                    # (tb, 1) int32
        nclass = cent_ref.shape[0]
        cls_iota = jax.lax.broadcasted_iota(jnp.int32, (tb, nclass), 1)
        one_hot_bool = (cls_iota == lbl)                         # (tb, C)
        mm_dtype = jnp.bfloat16 if cent_bf16 else jnp.float32
        one_hot = one_hot_bool.astype(mm_dtype)
        cent = cent_ref[...].astype(mm_dtype)                    # (C, nbit)
        # centroids[labels] as a one-hot matmul on the MXU (bf16 exact for +/-1)
        cent_sel = jnp.dot(one_hot, cent, preferred_element_type=jnp.float32)

    # per-row similarity hinge and quantization regularizer (lane reductions)
    sl_per = jnp.sum(jnp.maximum(margin - code * cent_sel, 0.0),
                     axis=1, keepdims=True)                      # (tb, 1)
    reg_per = jnp.sum(code * code, axis=1, keepdims=True)        # (tb, 1)

    if use_ce:
        # CE = (max + logsumexp) - true_logit, no full (tb,C) log-softmax.
        logits = logits_ref[...].astype(jnp.float32)             # (tb, C)
        m = jnp.max(logits, axis=1, keepdims=True)
        lse = jnp.log(jnp.sum(jnp.exp(logits - m), axis=1, keepdims=True))
        if pregather:
            true_logit = tl_ref[...].astype(jnp.float32)         # (tb, 1)
        else:
            true_logit = jnp.sum(jnp.where(one_hot_bool, logits, 0.0),
                                 axis=1, keepdims=True)
        ce_per = (m + lse) - true_logit                          # (tb, 1)

    # --- mask rows past the true batch (padding of clamped / partial tiles) ---
    # NOTE: must stay a select (jnp.where), never a multiply, so garbage rows
    # (including Inf/NaN from exp on uninitialized VMEM) cannot poison the sums.
    tile = c * n_inner + j
    row = tile * tb + jax.lax.broadcasted_iota(jnp.int32, (tb, 1), 0)
    valid = row < b_total

    sl_sum = jnp.sum(jnp.where(valid, sl_per, 0.0))
    reg_sum = jnp.sum(jnp.where(valid, reg_per, 0.0))

    # pack the 2-3 block sums into this core's (1, 8, 128) partial-sum block
    lane = jax.lax.broadcasted_iota(jnp.int32, (1, 8, 128), 2)
    vec = jnp.where(lane == 0, sl_sum, 0.0)
    vec = jnp.where(lane == 2, reg_sum, vec)
    if use_ce:
        ce_sum = jnp.sum(jnp.where(valid, ce_per, 0.0))
        vec = jnp.where(lane == 1, ce_sum, vec)
    out_ref[...] += vec


def _plan_tiling(B, C, nbit, use_ce, pregather, cent_bf16, tb_user):
    """Byte-based batch-tile selection + generation-aware VMEM budget."""
    try:
        vmem_cap = int(pltpu.get_tpu_info().vmem_capacity_bytes)
    except Exception:
        vmem_cap = 64 * 1024 * 1024                      # conservative: v7x
    vmem_budget = min(int(vmem_cap * 0.75), 96 * 1024 * 1024)

    # HBM bytes DMA'd per batch row (per pipeline buffer).
    row_dma = 4 * nbit                                   # code_logits
    if pregather:
        row_dma += 4 * nbit                              # pre-gathered cent_sel
        if use_ce:
            row_dma += 4 * C + 4 * 128                   # logits + lane-padded (tb,1) true-logit
    else:
        row_dma += 4 * 128                               # (tb,1) int32 labels pads to 128 lanes
        if use_ce:
            row_dma += 4 * C                             # logits
    # In-kernel temporaries that scale with tb (one_hot, exp(logits-m), products).
    row_tmp = 6 * 4 * nbit
    if not pregather:
        row_tmp += ((2 if cent_bf16 else 4) + 4) * C
    if use_ce:
        row_tmp += 3 * 4 * C
    fixed = 2 * 1024 * 1024                              # misc / compiler scratch slack
    if not pregather:
        fixed += 2 * C * nbit * (2 if cent_bf16 else 4)  # resident centroids (x2 safety)

    tb_vmem = max(8, (vmem_budget - fixed) // (2 * row_dma + row_tmp))

    if tb_user is None:
        target = 2 * 1024 * 1024                         # ~2 MiB of DMA per grid step
        tb = max(512, target // row_dma)
        tb = min(tb, tb_vmem)
    else:
        tb = int(tb_user)

    if B >= 8:
        tb = max(8, (min(tb, B) // 8) * 8)               # multiple of 8, never > B
    else:
        tb = _round_up(max(B, 1), 8)

    n_tiles = -(-B // tb)
    n_cores = 2 if n_tiles >= 2 else 1                   # v7x has 2 TCs; harmless elsewhere
    n_inner = -(-n_tiles // n_cores)
    return tb, n_tiles, n_cores, n_inner, vmem_budget


def dpn_loss(logits, code_logits, labels, centroids, *,
             margin=1.0, ce=0.0, sl=1.0, reg=0.1,
             tb=None, pregather=None, centroids_bf16=True):
    """Pallas DPNLoss (multiclass=False). Returns (4,) f32 [total, sl, ce, reg].

    `labels` may be int class indices (B,) or a one-hot (B, C) matrix (argmax'd
    here, i.e. the module's onehot=True path).  When the ce weight is 0 the CE
    term is elided entirely (out[2] reported as 0.0) and logits are never DMA'd.
    `centroids_bf16=True` runs the gather matmul in bf16 -- exact for the
    module's +/-1 (or any bf16-representable) centroids.
    """
    if labels.ndim == 2:                                  # onehot=True semantics
        labels = jnp.argmax(labels, axis=1)
    labels = labels.astype(jnp.int32)

    code_logits = code_logits.astype(jnp.float32)
    B, nbit = code_logits.shape
    C = centroids.shape[0]
    ce_w, sl_w, reg_w = float(ce), float(sl), float(reg)
    use_ce = ce_w != 0.0

    if pregather is None:
        # Pre-gathering trades one extra (B,nbit) DMA stream for dropping the
        # (tb,C) one-hot temporaries and the tb x C x nbit gather matmul; only
        # worth it once C is much larger than nbit.
        pregather = C >= max(1024, 8 * nbit)
    pregather = bool(pregather)

    tb, n_tiles, n_cores, n_inner, vmem_budget = _plan_tiling(
        B, C, nbit, use_ce, pregather, centroids_bf16, tb)

    def row_map(c, j):                                    # clamp tiles past the end
        t = jnp.minimum(c * n_inner + j, n_tiles - 1)
        return (t, 0)

    # ---- inputs (order must match the kernel's ref unpacking) ----
    if pregather:
        cent_sel = jnp.take(centroids.astype(jnp.float32), labels, axis=0)   # (B, nbit)
        inputs = [code_logits, cent_sel]
        if use_ce:
            logits_f = logits.astype(jnp.float32)
            true_logit = jnp.take_along_axis(logits_f, labels[:, None], axis=1)  # (B, 1)
            inputs += [logits_f, true_logit]
    else:
        cent_arr = centroids.astype(jnp.bfloat16 if centroids_bf16 else jnp.float32)
        inputs = [labels.reshape(-1, 1), code_logits, cent_arr]
        if use_ce:
            inputs.append(logits.astype(jnp.float32))

    def make_in_specs(single_buffer_centroids):
        if pregather:
            specs = [pl.BlockSpec((tb, nbit), row_map),          # code_logits
                     pl.BlockSpec((tb, nbit), row_map)]          # cent_sel
            if use_ce:
                specs += [pl.BlockSpec((tb, C), row_map),        # logits
                          pl.BlockSpec((tb, 1), row_map)]        # true logit
            return specs
        cent_kwargs = {}
        if single_buffer_centroids and hasattr(pl, "Buffered"):
            cent_kwargs["pipeline_mode"] = pl.Buffered(1)        # fetched once; no double buffer
        specs = [pl.BlockSpec((tb, 1), row_map),                 # labels (int32)
                 pl.BlockSpec((tb, nbit), row_map),              # code_logits
                 pl.BlockSpec((C, nbit), lambda c, j: (0, 0), **cent_kwargs)]
        if use_ce:
            specs.append(pl.BlockSpec((tb, C), row_map))         # logits
        return specs

    kernel = functools.partial(
        _dpn_loss_kernel, margin=float(margin), use_ce=use_ce,
        pregather=pregather, cent_bf16=bool(centroids_bf16),
        b_total=B, tb=tb, n_inner=n_inner)

    # advisory cost hint for the XLA scheduler
    flops = 6 * B * nbit + (0 if pregather else 2 * B * C * nbit + B * C)
    transcendentals = B * C if use_ce else 0
    bytes_accessed = 4 * B * nbit + n_cores * 8 * 128 * 4
    if pregather:
        bytes_accessed += 4 * B * nbit + (4 * B * C + 4 * B if use_ce else 0)
    else:
        bytes_accessed += 4 * B + 4 * C * nbit + (4 * B * C if use_ce else 0)
    if use_ce:
        flops += 5 * B * C
    cost = pl.CostEstimate(flops=int(flops), transcendentals=int(transcendentals),
                           bytes_accessed=int(bytes_accessed))

    def build(single_buffer_centroids):
        return pl.pallas_call(
            kernel,
            out_shape=jax.ShapeDtypeStruct((n_cores, 8, 128), jnp.float32),
            grid=(n_cores, n_inner),
            in_specs=make_in_specs(single_buffer_centroids),
            out_specs=pl.BlockSpec((1, 8, 128), lambda c, j: (c, 0, 0)),
            compiler_params=pltpu.CompilerParams(
                dimension_semantics=("parallel", "arbitrary"),
                vmem_limit_bytes=int(vmem_budget)),
            cost_estimate=cost,
        )

    if pregather:
        raw = build(False)(*inputs)
    else:
        try:
            raw = build(True)(*inputs)        # single-buffered resident centroids
        except Exception:
            raw = build(False)(*inputs)       # fallback if pipeline_mode unsupported

    # ---- finalize in JAX: sum per-core partials, means over the TRUE batch ----
    part = jnp.sum(raw, axis=0)[0]            # (128,): lane0=sl lane1=ce lane2=reg
    loss_sl = part[0] / B
    loss_ce = part[1] / B
    loss_reg = part[2] / (B * nbit)
    total = sl_w * loss_sl + ce_w * loss_ce + reg_w * loss_reg
    return jnp.stack([total, loss_sl, loss_ce, loss_reg])


def _reference(logits, code, label_idx, cent, margin, ce, sl, reg):
    # plain-JAX mirror of the PyTorch module (multiclass=False)
    logp = jax.nn.log_softmax(logits, axis=1)
    loss_ce = -jnp.mean(logp[jnp.arange(logits.shape[0]), label_idx])
    loss_sl = jnp.mean(
        jnp.sum(jnp.maximum(margin - code * cent[label_idx], 0.0), axis=1))
    loss_reg = jnp.mean(code ** 2)
    total = sl * loss_sl + ce * loss_ce + reg * loss_reg
    return jnp.stack([total, loss_sl, loss_ce, loss_reg])


if __name__ == "__main__":
    margin, sl_w, reg_w = 1.0, 1.0, 0.1
    key = jax.random.PRNGKey(0)

    configs = [
        # default module config (ce=0): CE branch + logits DMA elided; single tile
        dict(B=8,  C=4,   nbit=32, tb=None, ce_w=0.0, pregather=None,  bf16=True,  binary=True,  onehot_labels=False),
        # ce enabled, 2 tiles -> 2-way parallel axis + masked last tile; one-hot label input; bf16 gather
        dict(B=12, C=128, nbit=32, tb=8,    ce_w=0.7, pregather=None,  bf16=True,  binary=True,  onehot_labels=True),
        # forced pre-gather path (cent_sel + true-logit gathered in XLA), with CE
        dict(B=12, C=8,   nbit=32, tb=8,    ce_w=0.7, pregather=True,  bf16=True,  binary=True,  onehot_labels=False),
        # pre-gather path without CE
        dict(B=16, C=4,   nbit=32, tb=8,    ce_w=0.0, pregather=True,  bf16=True,  binary=True,  onehot_labels=False),
        # f32 gather matmul with non-binary centroids (bf16 exactness flag off)
        dict(B=16, C=6,   nbit=32, tb=8,    ce_w=0.3, pregather=False, bf16=False, binary=False, onehot_labels=False),
        # auto tb with B not a multiple of 8 (padded last tile, 2-way split)
        dict(B=12, C=4,   nbit=32, tb=None, ce_w=0.0, pregather=None,  bf16=True,  binary=True,  onehot_labels=False),
    ]

    for idx, cfg in enumerate(configs):
        B, C, NBIT = cfg["B"], cfg["C"], cfg["nbit"]
        k1, k2, k3, k4 = jax.random.split(jax.random.fold_in(key, idx), 4)

        logits = jax.random.normal(k1, (B, C), dtype=jnp.float32)
        code_logits = jax.random.normal(k2, (B, NBIT), dtype=jnp.float32)
        label_idx = jax.random.randint(k3, (B,), 0, C)
        if cfg["binary"]:
            centroids = jnp.where(jax.random.normal(k4, (C, NBIT)) >= 0,
                                  1.0, -1.0).astype(jnp.float32)
        else:
            centroids = jax.random.normal(k4, (C, NBIT), dtype=jnp.float32)

        labels_in = (jax.nn.one_hot(label_idx, C, dtype=jnp.float32)
                     if cfg["onehot_labels"] else label_idx)

        out = dpn_loss(logits, code_logits, labels_in, centroids,
                       margin=margin, ce=cfg["ce_w"], sl=sl_w, reg=reg_w,
                       tb=cfg["tb"], pregather=cfg["pregather"],
                       centroids_bf16=cfg["bf16"])
        out = jax.block_until_ready(out)

        ref = _reference(logits, code_logits, label_idx, centroids,
                         margin, cfg["ce_w"], sl_w, reg_w)

        assert jnp.allclose(out[0], ref[0], rtol=1e-5, atol=1e-5), (idx, out[0], ref[0])
        assert jnp.allclose(out[1], ref[1], rtol=1e-5, atol=1e-5), (idx, out[1], ref[1])
        assert jnp.allclose(out[3], ref[3], rtol=1e-5, atol=1e-5), (idx, out[3], ref[3])
        if cfg["ce_w"] != 0.0:   # CE is only computed (and reported) when weighted
            assert jnp.allclose(out[2], ref[2], rtol=1e-5, atol=1e-5), (idx, out[2], ref[2])

    # TODO(synk): multiclass=True branch (sigmoid BCE + multi-hot-weighted per-class
    # hinge) not implemented; the module's default config is multiclass=False.
    print("KERNEL_OK")
</pallas_src>

<mosaic_0001>
module attributes {stable_mosaic.version = 11 : i64} {
  func.func @_dpn_loss_kernel(%arg0: i32, %arg1: i32, %arg2: memref<8x1xi32, #tpu.memory_space<vmem>>, %arg3: memref<8x32xf32, #tpu.memory_space<vmem>>, %arg4: memref<4x32xbf16, #tpu.memory_space<vmem>>, %arg5: memref<1x8x128xf32, #tpu.memory_space<vmem>>) attributes {dimension_semantics = [#tpu.dimension_semantics<parallel>, #tpu.dimension_semantics<arbitrary>], iteration_bounds = array<i64: 1, 1>, scalar_prefetch = 0 : i64, scratch_operands = 0 : i64, tpu.core_type = #tpu.core_type<tc>, window_params = [{transform_indices = @transform_0, window_bounds = array<i64: 8, 1>}, {transform_indices = @transform_1, window_bounds = array<i64: 8, 32>}, {pipeline_mode = #tpu.pipeline_mode<synchronous>, transform_indices = @transform_2, window_bounds = array<i64: 4, 32>}, {transform_indices = @transform_3, window_bounds = array<i64: 1, 8, 128>}]} {
    %c0_i32 = arith.constant 0 : i32
    %0 = arith.cmpi eq, %arg1, %c0_i32 : i32
    %1 = arith.extui %0 : i1 to i32
    %c0_i32_0 = arith.constant 0 : i32
    %2 = arith.cmpi ne, %1, %c0_i32_0 : i32
    scf.if %2 {
      %cst_23 = arith.constant 0.000000e+00 : f32
      %56 = vector.broadcast %cst_23 : f32 to vector<1x8x128xf32>
      %c0_24 = arith.constant 0 : index
      %c0_25 = arith.constant 0 : index
      %c0_26 = arith.constant 0 : index
      %57 = vector.load %arg5[%c0_24, %c0_25, %c0_26] : memref<1x8x128xf32, #tpu.memory_space<vmem>>, vector<1x8x128xf32>
      tpu.vector_store %arg5[%c0_24, %c0_25, %c0_26], %56 {strides = array<i32>} : memref<1x8x128xf32, #tpu.memory_space<vmem>>, vector<1x8x128xf32>,
    } else {
    }
    %c0 = arith.constant 0 : index
    %c0_1 = arith.constant 0 : index
    %3 = vector.load %arg3[%c0, %c0_1] : memref<8x32xf32, #tpu.memory_space<vmem>>, vector<8x32xf32>
    %c0_2 = arith.constant 0 : index
    %c0_3 = arith.constant 0 : index
    %4 = vector.load %arg2[%c0_2, %c0_3] : memref<8x1xi32, #tpu.memory_space<vmem>>, vector<8x1xi32>
    %5 = tpu.iota {dimensions = array<i32: 1>} : vector<8x4xi32>
    %6 = vector.broadcast %4 : vector<8x1xi32> to vector<8x4xi32>
    %7 = arith.cmpi eq, %5, %6 : vector<8x4xi32>
    %8 = arith.extui %7 : vector<8x4xi1> to vector<8x4xi32>
    %9 = arith.sitofp %8 : vector<8x4xi32> to vector<8x4xf32>
    %10 = arith.truncf %9 : vector<8x4xf32> to vector<8x4xbf16>
    %c0_4 = arith.constant 0 : index
    %c0_5 = arith.constant 0 : index
    %11 = vector.load %arg4[%c0_4, %c0_5] : memref<4x32xbf16, #tpu.memory_space<vmem>>, vector<4x32xbf16>
    %cst = arith.constant dense<0.000000e+00> : vector<8x32xf32>
    %12 = tpu.matmul %10, %11, %cst {dimension_numbers = #tpu.dot_dimension_numbers<[1], [0], [0], [1], [0, 0, 1, 1], [], []>} : vector<8x4xbf16>, vector<4x32xbf16>, vector<8x32xf32> -> vector<8x32xf32>
    %13 = arith.mulf %3, %12 : vector<8x32xf32>
    %cst_6 = arith.constant 1.000000e+00 : f32
    %14 = vector.broadcast %cst_6 : f32 to vector<8x32xf32>
    %15 = arith.subf %14, %13 : vector<8x32xf32>
    %cst_7 = arith.constant 0.000000e+00 : f32
    %16 = vector.broadcast %cst_7 : f32 to vector<8x32xf32>
    %17 = arith.maximumf %15, %16 : vector<8x32xf32>
    %cst_8 = arith.constant dense<0.000000e+00> : vector<8xf32>
    %18 = vector.multi_reduction <add>, %17, %cst_8 [1] : vector<8x32xf32> to vector<8xf32>
    %19 = vector.shape_cast %18 : vector<8xf32> to vector<8x1xf32>
    %20 = arith.mulf %3, %3 : vector<8x32xf32>
    %cst_9 = arith.constant dense<0.000000e+00> : vector<8xf32>
    %21 = vector.multi_reduction <add>, %20, %cst_9 [1] : vector<8x32xf32> to vector<8xf32>
    %22 = vector.shape_cast %21 : vector<8xf32> to vector<8x1xf32>
    %c1_i32 = arith.constant 1 : i32
    %23 = arith.muli %arg0, %c1_i32 : i32
    %24 = arith.addi %23, %arg1 : i32
    %c8_i32 = arith.constant 8 : i32
    %25 = arith.muli %24, %c8_i32 : i32
    %26 = tpu.iota {dimensions = array<i32: 0>} : vector<8x1xi32>
    %27 = vector.broadcast %25 : i32 to vector<8x1xi32>
    %28 = arith.addi %27, %26 : vector<8x1xi32>
    %c8_i32_10 = arith.constant 8 : i32
    %29 = vector.broadcast %c8_i32_10 : i32 to vector<8x1xi32>
    %30 = arith.cmpi slt, %28, %29 : vector<8x1xi32>
    %cst_11 = arith.constant 0.000000e+00 : f32
    %31 = vector.broadcast %cst_11 : f32 to vector<8x1xf32>
    %32 = arith.select %30, %19, %31 : vector<8x1xi1>, vector<8x1xf32>
    %33 = vector.shape_cast %32 : vector<8x1xf32> to vector<1x8x1xf32>
    %cst_12 = arith.constant dense<0.000000e+00> : vector<1xf32>
    %34 = vector.multi_reduction <add>, %33, %cst_12 [1, 2] : vector<1x8x1xf32> to vector<1xf32>
    %35 = vector.shape_cast %34 : vector<1xf32> to vector<1x1x1xf32>
    %36 = vector.extract %35[0, 0, 0] : f32 from vector<1x1x1xf32>
    %cst_13 = arith.constant 0.000000e+00 : f32
    %37 = vector.broadcast %cst_13 : f32 to vector<8x1xf32>
    %38 = arith.select %30, %22, %37 : vector<8x1xi1>, vector<8x1xf32>
    %39 = vector.shape_cast %38 : vector<8x1xf32> to vector<1x8x1xf32>
    %cst_14 = arith.constant dense<0.000000e+00> : vector<1xf32>
    %40 = vector.multi_reduction <add>, %39, %cst_14 [1, 2] : vector<1x8x1xf32> to vector<1xf32>
    %41 = vector.shape_cast %40 : vector<1xf32> to vector<1x1x1xf32>
    %42 = vector.extract %41[0, 0, 0] : f32 from vector<1x1x1xf32>
    %43 = tpu.iota {dimensions = array<i32: 2>} : vector<1x8x128xi32>
    %c0_i32_15 = arith.constant 0 : i32
    %44 = vector.broadcast %c0_i32_15 : i32 to vector<1x8x128xi32>
    %45 = arith.cmpi eq, %43, %44 : vector<1x8x128xi32>
    %cst_16 = arith.constant 0.000000e+00 : f32
    %46 = vector.broadcast %36 : f32 to vector<1x8x128xf32>
    %47 = vector.broadcast %cst_16 : f32 to vector<1x8x128xf32>
    %48 = arith.select %45, %46, %47 : vector<1x8x128xi1>, vector<1x8x128xf32>
    %c2_i32 = arith.constant 2 : i32
    %49 = vector.broadcast %c2_i32 : i32 to vector<1x8x128xi32>
    %50 = arith.cmpi eq, %43, %49 : vector<1x8x128xi32>
    %51 = vector.broadcast %42 : f32 to vector<1x8x128xf32>
    %52 = arith.select %50, %51, %48 : vector<1x8x128xi1>, vector<1x8x128xf32>
    %c0_17 = arith.constant 0 : index
    %c0_18 = arith.constant 0 : index
    %c0_19 = arith.constant 0 : index
    %53 = vector.load %arg5[%c0_17, %c0_18, %c0_19] : memref<1x8x128xf32, #tpu.memory_space<vmem>>, vector<1x8x128xf32>
    %54 = arith.addf %53, %52 : vector<1x8x128xf32>
    %c0_20 = arith.constant 0 : index
    %c0_21 = arith.constant 0 : index
    %c0_22 = arith.constant 0 : index
    %55 = vector.load %arg5[%c0_20, %c0_21, %c0_22] : memref<1x8x128xf32, #tpu.memory_space<vmem>>, vector<1x8x128xf32>
    tpu.vector_store %arg5[%c0_20, %c0_21, %c0_22], %54 {strides = array<i32>} : memref<1x8x128xf32, #tpu.memory_space<vmem>>, vector<1x8x128xf32>,
    return
  }
  func.func @transform_0(%arg0: i32, %arg1: i32) -> (i32, i32) {
    %c1_i32 = arith.constant 1 : i32
    %0 = arith.muli %arg0, %c1_i32 : i32
    %1 = arith.addi %0, %arg1 : i32
    %c0_i32 = arith.constant 0 : i32
    %2 = arith.minsi %1, %c0_i32 : i32
    %c0_i32_0 = arith.constant 0 : i32
    %c0_i32_1 = arith.constant 0 : i32
    return %2, %c0_i32_0 : i32, i32
  }
  func.func @transform_1(%arg0: i32, %arg1: i32) -> (i32, i32) {
    %c1_i32 = arith.constant 1 : i32
    %0 = arith.muli %arg0, %c1_i32 : i32
    %1 = arith.addi %0, %arg1 : i32
    %c0_i32 = arith.constant 0 : i32
    %2 = arith.minsi %1, %c0_i32 : i32
    %c0_i32_0 = arith.constant 0 : i32
    %c0_i32_1 = arith.constant 0 : i32
    return %2, %c0_i32_0 : i32, i32
  }
  func.func @transform_2(%arg0: i32, %arg1: i32) -> (i32, i32) {
    %c0_i32 = arith.constant 0 : i32
    %c0_i32_0 = arith.constant 0 : i32
    %c0_i32_1 = arith.constant 0 : i32
    return %c0_i32, %c0_i32_0 : i32, i32
  }
  func.func @transform_3(%arg0: i32, %arg1: i32) -> (i32, i32, i32) {
    %c0_i32 = arith.constant 0 : i32
    %c0_i32_0 = arith.constant 0 : i32
    %c0_i32_1 = arith.constant 0 : i32
    return %arg0, %c0_i32, %c0_i32_0 : i32, i32, i32
  }
}

module attributes {stable_mosaic.version = 11 : i64} {
  func.func @_dpn_loss_kernel(%arg0: i32, %arg1: i32, %arg2: memref<8x1xi32, #tpu.memory_space<vmem>>, %arg3: memref<8x32xf32, #tpu.memory_space<vmem>>, %arg4: memref<4x32xbf16, #tpu.memory_space<vmem>>, %arg5: memref<1x8x128xf32, #tpu.memory_space<vmem>>) attributes {dimension_semantics = [#tpu.dimension_semantics<parallel>, #tpu.dimension_semantics<arbitrary>], iteration_bounds = array<i64: 1, 1>, scalar_prefetch = 0 : i64, scratch_operands = 0 : i64, tpu.core_type = #tpu.core_type<tc>, window_params = [{transform_indices = @transform_0, window_bounds = array<i64: 8, 1>}, {transform_indices = @transform_1, window_bounds = array<i64: 8, 32>}, {pipeline_mode = #tpu.pipeline_mode<synchronous>, transform_indices = @transform_2, window_bounds = array<i64: 4, 32>}, {transform_indices = @transform_3, window_bounds = array<i64: 1, 8, 128>}]} {
    %c0_i32 = arith.constant 0 : i32
    %0 = arith.cmpi eq, %arg1, %c0_i32 : i32
    %1 = arith.extui %0 : i1 to i32
    %c0_i32_0 = arith.constant 0 : i32
    %2 = arith.cmpi ne, %1, %c0_i32_0 : i32
    scf.if %2 {
      %cst_23 = arith.constant 0.000000e+00 : f32
      %56 = vector.broadcast %cst_23 : f32 to vector<1x8x128xf32>
      %c0_24 = arith.constant 0 : index
      %c0_25 = arith.constant 0 : index
      %c0_26 = arith.constant 0 : index
      %57 = vector.load %arg5[%c0_24, %c0_25, %c0_26] : memref<1x8x128xf32, #tpu.memory_space<vmem>>, vector<1x8x128xf32>
      tpu.vector_store %arg5[%c0_24, %c0_25, %c0_26], %56 {strides = array<i32>} : memref<1x8x128xf32, #tpu.memory_space<vmem>>, vector<1x8x128xf32>,
    } else {
    }
    %c0 = arith.constant 0 : index
    %c0_1 = arith.constant 0 : index
    %3 = vector.load %arg3[%c0, %c0_1] : memref<8x32xf32, #tpu.memory_space<vmem>>, vector<8x32xf32>
    %c0_2 = arith.constant 0 : index
    %c0_3 = arith.constant 0 : index
    %4 = vector.load %arg2[%c0_2, %c0_3] : memref<8x1xi32, #tpu.memory_space<vmem>>, vector<8x1xi32>
    %5 = tpu.iota {dimensions = array<i32: 1>} : vector<8x4xi32>
    %6 = vector.broadcast %4 : vector<8x1xi32> to vector<8x4xi32>
    %7 = arith.cmpi eq, %5, %6 : vector<8x4xi32>
    %8 = arith.extui %7 : vector<8x4xi1> to vector<8x4xi32>
    %9 = arith.sitofp %8 : vector<8x4xi32> to vector<8x4xf32>
    %10 = arith.truncf %9 : vector<8x4xf32> to vector<8x4xbf16>
    %c0_4 = arith.constant 0 : index
    %c0_5 = arith.constant 0 : index
    %11 = vector.load %arg4[%c0_4, %c0_5] : memref<4x32xbf16, #tpu.memory_space<vmem>>, vector<4x32xbf16>
    %cst = arith.constant dense<0.000000e+00> : vector<8x32xf32>
    %12 = tpu.matmul %10, %11, %cst {dimension_numbers = #tpu.dot_dimension_numbers<[1], [0], [0], [1], [0, 0, 1, 1], [], []>} : vector<8x4xbf16>, vector<4x32xbf16>, vector<8x32xf32> -> vector<8x32xf32>
    %13 = arith.mulf %3, %12 : vector<8x32xf32>
    %cst_6 = arith.constant 1.000000e+00 : f32
    %14 = vector.broadcast %cst_6 : f32 to vector<8x32xf32>
    %15 = arith.subf %14, %13 : vector<8x32xf32>
    %cst_7 = arith.constant 0.000000e+00 : f32
    %16 = vector.broadcast %cst_7 : f32 to vector<8x32xf32>
    %17 = arith.maximumf %15, %16 : vector<8x32xf32>
    %cst_8 = arith.constant dense<0.000000e+00> : vector<8xf32>
    %18 = vector.multi_reduction <add>, %17, %cst_8 [1] : vector<8x32xf32> to vector<8xf32>
    %19 = vector.shape_cast %18 : vector<8xf32> to vector<8x1xf32>
    %20 = arith.mulf %3, %3 : vector<8x32xf32>
    %cst_9 = arith.constant dense<0.000000e+00> : vector<8xf32>
    %21 = vector.multi_reduction <add>, %20, %cst_9 [1] : vector<8x32xf32> to vector<8xf32>
    %22 = vector.shape_cast %21 : vector<8xf32> to vector<8x1xf32>
    %c1_i32 = arith.constant 1 : i32
    %23 = arith.muli %arg0, %c1_i32 : i32
    %24 = arith.addi %23, %arg1 : i32
    %c8_i32 = arith.constant 8 : i32
    %25 = arith.muli %24, %c8_i32 : i32
    %26 = tpu.iota {dimensions = array<i32: 0>} : vector<8x1xi32>
    %27 = vector.broadcast %25 : i32 to vector<8x1xi32>
    %28 = arith.addi %27, %26 : vector<8x1xi32>
    %c8_i32_10 = arith.constant 8 : i32
    %29 = vector.broadcast %c8_i32_10 : i32 to vector<8x1xi32>
    %30 = arith.cmpi slt, %28, %29 : vector<8x1xi32>
    %cst_11 = arith.constant 0.000000e+00 : f32
    %31 = vector.broadcast %cst_11 : f32 to vector<8x1xf32>
    %32 = arith.select %30, %19, %31 : vector<8x1xi1>, vector<8x1xf32>
    %33 = vector.shape_cast %32 : vector<8x1xf32> to vector<1x8x1xf32>
    %cst_12 = arith.constant dense<0.000000e+00> : vector<1xf32>
    %34 = vector.multi_reduction <add>, %33, %cst_12 [1, 2] : vector<1x8x1xf32> to vector<1xf32>
    %35 = vector.shape_cast %34 : vector<1xf32> to vector<1x1x1xf32>
    %36 = vector.extract %35[0, 0, 0] : f32 from vector<1x1x1xf32>
    %cst_13 = arith.constant 0.000000e+00 : f32
    %37 = vector.broadcast %cst_13 : f32 to vector<8x1xf32>
    %38 = arith.select %30, %22, %37 : vector<8x1xi1>, vector<8x1xf32>
    %39 = vector.shape_cast %38 : vector<8x1xf32> to vector<1x8x1xf32>
    %cst_14 = arith.constant dense<0.000000e+00> : vector<1xf32>
    %40 = vector.multi_reduction <add>, %39, %cst_14 [1, 2] : vector<1x8x1xf32> to vector<1xf32>
    %41 = vector.shape_cast %40 : vector<1xf32> to vector<1x1x1xf32>
    %42 = vector.extract %41[0, 0, 0] : f32 from vector<1x1x1xf32>
    %43 = tpu.iota {dimensions = array<i32: 2>} : vector<1x8x128xi32>
    %c0_i32_15 = arith.constant 0 : i32
    %44 = vector.broadcast %c0_i32_15 : i32 to vector<1x8x128xi32>
    %45 = arith.cmpi eq, %43, %44 : vector<1x8x128xi32>
    %cst_16 = arith.constant 0.000000e+00 : f32
    %46 = vector.broadcast %36 : f32 to vector<1x8x128xf32>
    %47 = vector.broadcast %cst_16 : f32 to vector<1x8x128xf32>
    %48 = arith.select %45, %46, %47 : vector<1x8x128xi1>, vector<1x8x128xf32>
    %c2_i32 = arith.constant 2 : i32
    %49 = vector.broadcast %c2_i32 : i32 to vector<1x8x128xi32>
    %50 = arith.cmpi eq, %43, %49 : vector<1x8x128xi32>
    %51 = vector.broadcast %42 : f32 to vector<1x8x128xf32>
    %52 = arith.select %50, %51, %48 : vector<1x8x128xi1>, vector<1x8x128xf32>
    %c0_17 = arith.constant 0 : index
    %c0_18 = arith.constant 0 : index
    %c0_19 = arith.constant 0 : index
    %53 = vector.load %arg5[%c0_17, %c0_18, %c0_19] : memref<1x8x128xf32, #tpu.memory_space<vmem>>, vector<1x8x128xf32>
    %54 = arith.addf %53, %52 : vector<1x8x128xf32>
    %c0_20 = arith.constant 0 : index
    %c0_21 = arith.constant 0 : index
    %c0_22 = arith.constant 0 : index
    %55 = vector.load %arg5[%c0_20, %c0_21, %c0_22] : memref<1x8x128xf32, #tpu.memory_space<vmem>>, vector<1x8x128xf32>
    tpu.vector_store %arg5[%c0_20, %c0_21, %c0_22], %54 {strides = array<i32>} : memref<1x8x128xf32, #tpu.memory_space<vmem>>, vector<1x8x128xf32>,
    return
  }
  func.func @transform_0(%arg0: i32, %arg1: i32) -> (i32, i32) {
    %c1_i32 = arith.constant 1 : i32
    %0 = arith.muli %arg0, %c1_i32 : i32
    %1 = arith.addi %0, %arg1 : i32
    %c0_i32 = arith.constant 0 : i32
    %2 = arith.minsi %1, %c0_i32 : i32
    %c0_i32_0 = arith.constant 0 : i32
    %c0_i32_1 = arith.constant 0 : i32
    return %2, %c0_i32_0 : i32, i32
  }
  func.func @transform_1(%arg0: i32, %arg1: i32) -> (i32, i32) {
    %c1_i32 = arith.constant 1 : i32
    %0 = arith.muli %arg0, %c1_i32 : i32
    %1 = arith.addi %0, %arg1 : i32
    %c0_i32 = arith.constant 0 : i32
    %2 = arith.minsi %1, %c0_i32 : i32
    %c0_i32_0 = arith.constant 0 : i32
    %c0_i32_1 = arith.constant 0 : i32
    return %2, %c0_i32_0 : i32, i32
  }
  func.func @transform_2(%arg0: i32, %arg1: i32) -> (i32, i32) {
    %c0_i32 = arith.constant 0 : i32
    %c0_i32_0 = arith.constant 0 : i32
    %c0_i32_1 = arith.constant 0 : i32
    return %c0_i32, %c0_i32_0 : i32, i32
  }
  func.func @transform_3(%arg0: i32, %arg1: i32) -> (i32, i32, i32) {
    %c0_i32 = arith.constant 0 : i32
    %c0_i32_0 = arith.constant 0 : i32
    %c0_i32_1 = arith.constant 0 : i32
    return %arg0, %c0_i32, %c0_i32_0 : i32, i32, i32
  }
}

</mosaic_0001>

<llo_original>
// kernel: tpu_custom_call.1
$region0: #{tpu_custom_call.1}
  #allocation0 [shape = 'u32[]', space=smem, size = 0x4, offset = 0x4, fixed_abs, tag = 'smem constant byte address 0x4 - core index']
  #allocation1 [shape = 'u32[144,128]{1,0:T(1,128)}', space=vmem, size = 0x12000, scoped, tag = 'internal scratch']
  %s0 = inlined_call_operand.vmem [shape: s32[8,1], index: 0, kind: input, shape index: {}]
  %s1 = inlined_call_operand.vmem [shape: f32[8,32], index: 1, kind: input, shape index: {}]
  %s2 = inlined_call_operand.vmem [shape: bf16[4,32], index: 2, kind: input, shape index: {}]
  %s3 = inlined_call_operand.hbm [shape: f32[1,8,128], index: 3, kind: output, shape index: {}]
  %s4 = sld [smem:[#allocation0]]
  $region26: #{tpu_custom_call.1} parent=0
    _
  %s6 = ssub.s32 1, %s4
  %s7 = scalar_select 0, %s6, %s4
  $region1: #{tpu_custom_call.1} parent=0
    #allocation2 [shape = 'u8[4096]{0}', space=vmem, size = 0x1000, scoped, tag = 'output window, operand 0, single buffered']
    #allocation3 [shape = 's32[1]{0}', space=sflag, size = 0x4, scoped, tag = 'scoped memory for tpu_custom_call.1']
    %8 = vsyncpa [#allocation3], 0
    // Predicated region
    $region2: #{tpu_custom_call.1} parent=1 // pred_check
      _
    $region3: #{tpu_custom_call.1} parent=1 // pred_check_branch
      %10 = sbr.rel (0) target = $region5
    $region4: #{tpu_custom_call.1} parent=1 // pred_region
      %s11 = sadd.s32 0, 0
      %p12 = scmp.lt.s32.totalorder %s11, 0
      %s13 = scalar_select %p12, %s11, 0
      %p14 = scmp.lt.s32.totalorder %s13, 0
      %s15 = scalar_select %p14, %s13, 0
      %s16 = smul.addr %s15, 8
      %s17 = scalar_lea.vmem %s0, %s16
      %s18 = sadd.s32 0, 0
      %p19 = scmp.lt.s32.totalorder %s18, 0
      %s20 = scalar_select %p19, %s18, 0
    $region5: #{tpu_custom_call.1} parent=1 // pred_fallthru
      _
    // Predicated region
    $region6: #{tpu_custom_call.1} parent=1 // pred_check
      _
    $region7: #{tpu_custom_call.1} parent=1 // pred_check_branch
      %22 = sbr.rel (0) target = $region9
    $region8: #{tpu_custom_call.1} parent=1 // pred_region
      %s23 = sadd.s32 0, 0
      %p24 = scmp.lt.s32.totalorder %s23, 0
      %s25 = scalar_select %p24, %s23, 0
      %p26 = scmp.lt.s32.totalorder %s25, 0
      %s27 = scalar_select %p26, %s25, 0
      %s28 = smul.addr %s27, 8
      %s29 = scalar_lea.vmem %s1, %s28
      %s30 = sadd.s32 0, 0
      %p31 = scmp.lt.s32.totalorder %s30, 0
      %s32 = scalar_select %p31, %s30, 0
    $region9: #{tpu_custom_call.1} parent=1 // pred_fallthru
      _
    // Predicated region
    $region10: #{tpu_custom_call.1} parent=1 // pred_check
      _
    $region11: #{tpu_custom_call.1} parent=1 // pred_check_branch
      %34 = sbr.rel (0) target = $region13
    $region12: #{tpu_custom_call.1} parent=1 // pred_region
      _
    $region13: #{tpu_custom_call.1} parent=1 // pred_fallthru
      _
    %s35 = sadd.s32 0, 0
    %p36 = scmp.lt.s32.totalorder %s35, 0
    %s37 = scalar_select %p36, %s35, 0
    %p38 = scmp.lt.s32.totalorder %s37, 0
    %s39 = scalar_select %p38, %s37, 0
    %s40 = smul.addr %s39, 8
    %s41 = scalar_lea.vmem %s0, %s40
    %s42 = sadd.s32 0, 0
    %p43 = scmp.lt.s32.totalorder %s42, 0
    %s44 = scalar_select %p43, %s42, 0
    %p45 = scmp.lt.s32.totalorder %s44, 0
    %s46 = scalar_select %p45, %s44, 0
    %s47 = smul.addr %s46, 8
    %s48 = scalar_lea.vmem %s1, %s47
    %s49 = sadd.s32 0, 0
    %p50 = scmp.lt.s32.totalorder %s49, 0
    %s51 = scalar_select %p50, %s49, 0
    %p52 = scmp.lt.s32.totalorder %s51, 0
    %s53 = scalar_select %p52, %s51, 0
    %s54 = smul.addr %s53, 8
    %s55 = scalar_lea.vmem %s0, %s54
    %s56 = sadd.s32 0, 0
    %p57 = scmp.lt.s32.totalorder %s56, 0
    %s58 = scalar_select %p57, %s56, 0
    %s59 = sadd.s32 0, 0
    %p60 = scmp.lt.s32.totalorder %s59, 0
    %s61 = scalar_select %p60, %s59, 0
    %p62 = scmp.lt.s32.totalorder %s61, 0
    %s63 = scalar_select %p62, %s61, 0
    %s64 = smul.addr %s63, 8
    %s65 = scalar_lea.vmem %s1, %s64
    %s66 = sadd.s32 0, 0
    %p67 = scmp.lt.s32.totalorder %s66, 0
    %s68 = scalar_select %p67, %s66, 0
    %p70 = scmp.eq.s32.totalorder 0, 0
    // Predicated region
    $region14: #{tpu_custom_call.1} parent=1 // pred_check
      %p71 = pneg %p70
    $region15: #{tpu_custom_call.1} parent=1 // pred_check_branch
      %73 = sbr.rel (%p71) target = $region17
    $region16: #{tpu_custom_call.1} parent=1 // pred_region
      %74 = vst [vmem:[#allocation2] sm:$0xff] 0.0
    $region17: #{tpu_custom_call.1} parent=1 // pred_fallthru
      _
    %v75 = vld [vmem:[%s65] sm:$0xff]
    %v76 = vld [vmem:[%s55] sm:$0xff]
    %v77 = vlaneseq
    %v78 = vand.u32 %v77, 127
    %79 = vset.pattern.permute.xlu0 0
    %80 = vperm.xlu0 %79, %v76
    %v81 = vpop.permute.xlu0 %80
    %vm82 = vcmp.eq.s32.totalorder %v78, %v81
    %v83 = vsel %vm82, 1, 0
    %v84 = vcvt.s32.f32 %v83
    %v85 = vpack.c.bf16 %v84, %v84
    %v86 = vld [vmem:[%s2] sm:$0x3]
    %vm87 = vcmask 31744
    %v89 = vsel %vm87, %v85, 0
    %vm91 = vcmask 1041408
    %v93 = vsel %vm91, %v86, 0
    %95 = vmatprep.subr.bf16.mxu0 0
    %96 = vmatpush1.bf16.msra.mxu0 0
    %97 = vmatprep.subr.bf16.mxu0 0
    %98 = vmatpush1.bf16.msra.mxu0 0
    %99 = vmatprep.subr.bf16.mxu0 0
    %100 = vmatpush1.bf16.msra.mxu0 0
    %101 = vmatprep.subr.bf16.mxu0 0
    %102 = vmatpush1.bf16.msra.mxu0 0
    %103 = vmatprep.subr.bf16.mxu0 0
    %104 = vmatpush1.bf16.msra.mxu0 0
    %105 = vmatprep.subr.bf16.mxu0 0
    %106 = vmatpush1.bf16.msra.mxu0 0
    %107 = vmatprep.subr.bf16.mxu0 0
    %108 = vmatpush1.bf16.msra.mxu0 0
    %109 = vmatprep.subr.bf16.mxu0 0
    %110 = vmatpush1.bf16.msra.mxu0 %v93
    %111 = vmatprep.subr.bf16.mxu0 0
    %112 = vmatpush2.bf16.msra.mxu0 0
    %113 = vmatprep.subr.bf16.mxu0 0
    %114 = vmatpush2.bf16.msra.mxu0 0
    %115 = vmatprep.subr.bf16.mxu0 0
    %116 = vmatpush2.bf16.msra.mxu0 0
    %117 = vmatprep.subr.bf16.mxu0 0
    %118 = vmatpush2.bf16.msra.mxu0 0
    %119 = vmatprep.subr.bf16.mxu0 0
    %120 = vmatpush2.bf16.msra.mxu0 0
    %121 = vmatprep.subr.bf16.mxu0 0
    %122 = vmatpush2.bf16.msra.mxu0 0
    %123 = vmatprep.subr.bf16.mxu0 0
    %124 = vmatpush2.bf16.msra.mxu0 0
    %125 = vmatprep.subr.bf16.mxu0 0
    %126 = vmatpush2.bf16.msra.mxu0 0
    %127 = vmatprep.mubr.bf16.mxu0 0
    %128 = vmatmul.mubr.bf16.gmra.mxu0 %v89
    %v129 = vpop.f32.mrf.mxu0
    %v130 = vadd.f32 0.0, %v129
    %v131 = vpop.f32.mrf.mxu0
    %v132 = vpop.f32.mrf.mxu0
    %v133 = vpop.f32.mrf.mxu0
    %134 = vdwg.mxu0
    %v135 = vmul.f32 %v75, %v130
    %v136 = vsub.f32 1.0, %v135
    %v137 = vmax.f32 %v136, 0.0
    %vm138 = vcmask 261120
    %v139 = vsel %vm138, %v137, 0.0
    %140 = vadd.xlane.f32.xlu0 %v139
    %v141 = vpop.xlane.xlu0 %140
    %v142 = vmul.f32 %v75, %v75
    %v143 = vsel %vm138, %v142, 0.0
    %144 = vadd.xlane.f32.xlu0 %v143
    %v145 = vpop.xlane.xlu0 %144
    %s146 = sadd.s32 0, 0
    %s147 = smul.u32 %s146, 8
    %v148 = vlaneseq
    %v149 = vshrl.u32 %v148, 7
    %v150 = vstv %s147
    %v151 = vadd.s32 %v150, %v149
    %vm152 = vcmp.lt.s32.totalorder %v151, 8
    %v153 = vsel %vm152, %v141, 0.0
    %vm154 = vcmask 7168
    %v155 = vsel %vm154, %v153, 0.0
    %156 = vadd.xlane.f32.xlu0 %v155
    %v157 = vpop.xlane.xlu0 %156
    %v158 = vrot.slane %v157, 4
    %v159 = vadd.f32 %v157, %v158
    %v160 = vrot.slane %v159, 2
    %v161 = vadd.f32 %v159, %v160
    %v162 = vrot.slane %v161, 1
    %v163 = vadd.f32 %v161, %v162
    %s164 = vtos %v163
    %v165 = vsel %vm152, %v145, 0.0
    %v166 = vsel %vm154, %v165, 0.0
    %167 = vadd.xlane.f32.xlu0 %v166
    %v168 = vpop.xlane.xlu0 %167
    %v169 = vrot.slane %v168, 4
    %v170 = vadd.f32 %v168, %v169
    %v171 = vrot.slane %v170, 2
    %v172 = vadd.f32 %v170, %v171
    %v173 = vrot.slane %v172, 1
    %v174 = vadd.f32 %v172, %v173
    %s175 = vtos %v174
    %vm176 = vcmp.eq.s32.totalorder %v78, 0
    %v177 = vstv %s164
    %v178 = vsel %vm176, %v177, 0.0
    %vm179 = vcmp.eq.s32.totalorder %v78, 2
    %v180 = vstv %s175
    %v181 = vsel %vm179, %v180, %v178
    %v182 = vld [vmem:[#allocation2] sm:$0xff]
    %v183 = vadd.f32 %v182, %v181
    %184 = vst [vmem:[#allocation2] sm:$0xff] %v183
    // Predicated region
    $region18: #{tpu_custom_call.1} parent=1 // pred_check
      _
    $region19: #{tpu_custom_call.1} parent=1 // pred_check_branch
      %186 = sbr.rel (0) target = $region21
    $region20: #{tpu_custom_call.1} parent=1 // pred_region
      %s188 = ssub.s32 128, 128
      %189 = vsyncadd [#allocation3], %s188
      %s191 = sshll.u32 [#allocation2], 4
      %s192 = int_to_ptr.vmem [resolvable:$true] %s191
      %194 = dma.vmem_to_hbm [thread:$0]  %s192, 128, %s3, [#allocation3]
    $region21: #{tpu_custom_call.1} parent=1 // pred_fallthru
      _
    // Predicated region
    $region22: #{tpu_custom_call.1} parent=1 // pred_check
      _
    $region23: #{tpu_custom_call.1} parent=1 // pred_check_branch
      %196 = sbr.rel (0) target = $region25
    $region24: #{tpu_custom_call.1} parent=1 // pred_region
      %197 = dma.done [#allocation3], 128
    $region25: #{tpu_custom_call.1} parent=1 // pred_fallthru
      _
    %198 = vsyncpa [#allocation3], 1

// kernel: tpu_custom_call.1
$region0: #{tpu_custom_call.1}
  #allocation0 [shape = 'u32[]', space=smem, size = 0x4, offset = 0x4, fixed_abs, tag = 'smem constant byte address 0x4 - core index']
  #allocation1 [shape = 'u32[144,128]{1,0:T(1,128)}', space=vmem, size = 0x12000, scoped, tag = 'internal scratch']
  %s0 = inlined_call_operand.vmem [shape: s32[8,1], index: 0, kind: input, shape index: {}]
  %s1 = inlined_call_operand.vmem [shape: f32[8,32], index: 1, kind: input, shape index: {}]
  %s2 = inlined_call_operand.vmem [shape: bf16[4,32], index: 2, kind: input, shape index: {}]
  %s3 = inlined_call_operand.hbm [shape: f32[1,8,128], index: 3, kind: output, shape index: {}]
  %s4 = sld [smem:[#allocation0]]
  $region26: #{tpu_custom_call.1} parent=0
    _
  %s6 = ssub.s32 1, %s4
  %s7 = scalar_select 0, %s6, %s4
  $region1: #{tpu_custom_call.1} parent=0
    #allocation2 [shape = 'u8[4096]{0}', space=vmem, size = 0x1000, scoped, tag = 'output window, operand 0, single buffered']
    #allocation3 [shape = 's32[1]{0}', space=sflag, size = 0x4, scoped, tag = 'scoped memory for tpu_custom_call.1']
    %8 = vsyncpa [#allocation3], 0
    // Predicated region
    $region2: #{tpu_custom_call.1} parent=1 // pred_check
      _
    $region3: #{tpu_custom_call.1} parent=1 // pred_check_branch
      %10 = sbr.rel (0) target = $region5
    $region4: #{tpu_custom_call.1} parent=1 // pred_region
      %s11 = sadd.s32 0, 0
      %p12 = scmp.lt.s32.totalorder %s11, 0
      %s13 = scalar_select %p12, %s11, 0
      %p14 = scmp.lt.s32.totalorder %s13, 0
      %s15 = scalar_select %p14, %s13, 0
      %s16 = smul.addr %s15, 8
      %s17 = scalar_lea.vmem %s0, %s16
      %s18 = sadd.s32 0, 0
      %p19 = scmp.lt.s32.totalorder %s18, 0
      %s20 = scalar_select %p19, %s18, 0
    $region5: #{tpu_custom_call.1} parent=1 // pred_fallthru
      _
    // Predicated region
    $region6: #{tpu_custom_call.1} parent=1 // pred_check
      _
    $region7: #{tpu_custom_call.1} parent=1 // pred_check_branch
      %22 = sbr.rel (0) target = $region9
    $region8: #{tpu_custom_call.1} parent=1 // pred_region
      %s23 = sadd.s32 0, 0
      %p24 = scmp.lt.s32.totalorder %s23, 0
      %s25 = scalar_select %p24, %s23, 0
      %p26 = scmp.lt.s32.totalorder %s25, 0
      %s27 = scalar_select %p26, %s25, 0
      %s28 = smul.addr %s27, 8
      %s29 = scalar_lea.vmem %s1, %s28
      %s30 = sadd.s32 0, 0
      %p31 = scmp.lt.s32.totalorder %s30, 0
      %s32 = scalar_select %p31, %s30, 0
    $region9: #{tpu_custom_call.1} parent=1 // pred_fallthru
      _
    // Predicated region
    $region10: #{tpu_custom_call.1} parent=1 // pred_check
      _
    $region11: #{tpu_custom_call.1} parent=1 // pred_check_branch
      %34 = sbr.rel (0) target = $region13
    $region12: #{tpu_custom_call.1} parent=1 // pred_region
      _
    $region13: #{tpu_custom_call.1} parent=1 // pred_fallthru
      _
    %s35 = sadd.s32 0, 0
    %p36 = scmp.lt.s32.totalorder %s35, 0
    %s37 = scalar_select %p36, %s35, 0
    %p38 = scmp.lt.s32.totalorder %s37, 0
    %s39 = scalar_select %p38, %s37, 0
    %s40 = smul.addr %s39, 8
    %s41 = scalar_lea.vmem %s0, %s40
    %s42 = sadd.s32 0, 0
    %p43 = scmp.lt.s32.totalorder %s42, 0
    %s44 = scalar_select %p43, %s42, 0
    %p45 = scmp.lt.s32.totalorder %s44, 0
    %s46 = scalar_select %p45, %s44, 0
    %s47 = smul.addr %s46, 8
    %s48 = scalar_lea.vmem %s1, %s47
    %s49 = sadd.s32 0, 0
    %p50 = scmp.lt.s32.totalorder %s49, 0
    %s51 = scalar_select %p50, %s49, 0
    %p52 = scmp.lt.s32.totalorder %s51, 0
    %s53 = scalar_select %p52, %s51, 0
    %s54 = smul.addr %s53, 8
    %s55 = scalar_lea.vmem %s0, %s54
    %s56 = sadd.s32 0, 0
    %p57 = scmp.lt.s32.totalorder %s56, 0
    %s58 = scalar_select %p57, %s56, 0
    %s59 = sadd.s32 0, 0
    %p60 = scmp.lt.s32.totalorder %s59, 0
    %s61 = scalar_select %p60, %s59, 0
    %p62 = scmp.lt.s32.totalorder %s61, 0
    %s63 = scalar_select %p62, %s61, 0
    %s64 = smul.addr %s63, 8
    %s65 = scalar_lea.vmem %s1, %s64
    %s66 = sadd.s32 0, 0
    %p67 = scmp.lt.s32.totalorder %s66, 0
    %s68 = scalar_select %p67, %s66, 0
    %p70 = scmp.eq.s32.totalorder 0, 0
    // Predicated region
    $region14: #{tpu_custom_call.1} parent=1 // pred_check
      %p71 = pneg %p70
    $region15: #{tpu_custom_call.1} parent=1 // pred_check_branch
      %73 = sbr.rel (%p71) target = $region17
    $region16: #{tpu_custom_call.1} parent=1 // pred_region
      %74 = vst [vmem:[#allocation2] sm:$0xff] 0.0
    $region17: #{tpu_custom_call.1} parent=1 // pred_fallthru
      _
    %v75 = vld [vmem:[%s65] sm:$0xff]
    %v76 = vld [vmem:[%s55] sm:$0xff]
    %v77 = vlaneseq
    %v78 = vand.u32 %v77, 127
    %79 = vset.pattern.permute.xlu0 0
    %80 = vperm.xlu0 %79, %v76
    %v81 = vpop.permute.xlu0 %80
    %vm82 = vcmp.eq.s32.totalorder %v78, %v81
    %v83 = vsel %vm82, 1, 0
    %v84 = vcvt.s32.f32 %v83
    %v85 = vpack.c.bf16 %v84, %v84
    %v86 = vld [vmem:[%s2] sm:$0x3]
    %vm87 = vcmask 31744
    %v89 = vsel %vm87, %v85, 0
    %vm91 = vcmask 1041408
    %v93 = vsel %vm91, %v86, 0
    %95 = vmatprep.subr.bf16.mxu0 0
    %96 = vmatpush1.bf16.msra.mxu0 0
    %97 = vmatprep.subr.bf16.mxu0 0
    %98 = vmatpush1.bf16.msra.mxu0 0
    %99 = vmatprep.subr.bf16.mxu0 0
    %100 = vmatpush1.bf16.msra.mxu0 0
    %101 = vmatprep.subr.bf16.mxu0 0
    %102 = vmatpush1.bf16.msra.mxu0 0
    %103 = vmatprep.subr.bf16.mxu0 0
    %104 = vmatpush1.bf16.msra.mxu0 0
    %105 = vmatprep.subr.bf16.mxu0 0
    %106 = vmatpush1.bf16.msra.mxu0 0
    %107 = vmatprep.subr.bf16.mxu0 0
    %108 = vmatpush1.bf16.msra.mxu0 0
    %109 = vmatprep.subr.bf16.mxu0 0
    %110 = vmatpush1.bf16.msra.mxu0 %v93
    %111 = vmatprep.subr.bf16.mxu0 0
    %112 = vmatpush2.bf16.msra.mxu0 0
    %113 = vmatprep.subr.bf16.mxu0 0
    %114 = vmatpush2.bf16.msra.mxu0 0
    %115 = vmatprep.subr.bf16.mxu0 0
    %116 = vmatpush2.bf16.msra.mxu0 0
    %117 = vmatprep.subr.bf16.mxu0 0
    %118 = vmatpush2.bf16.msra.mxu0 0
    %119 = vmatprep.subr.bf16.mxu0 0
    %120 = vmatpush2.bf16.msra.mxu0 0
    %121 = vmatprep.subr.bf16.mxu0 0
    %122 = vmatpush2.bf16.msra.mxu0 0
    %123 = vmatprep.subr.bf16.mxu0 0
    %124 = vmatpush2.bf16.msra.mxu0 0
    %125 = vmatprep.subr.bf16.mxu0 0
    %126 = vmatpush2.bf16.msra.mxu0 0
    %127 = vmatprep.mubr.bf16.mxu0 0
    %128 = vmatmul.mubr.bf16.gmra.mxu0 %v89
    %v129 = vpop.f32.mrf.mxu0
    %v130 = vadd.f32 0.0, %v129
    %v131 = vpop.f32.mrf.mxu0
    %v132 = vpop.f32.mrf.mxu0
    %v133 = vpop.f32.mrf.mxu0
    %134 = vdwg.mxu0
    %v135 = vmul.f32 %v75, %v130
    %v136 = vsub.f32 1.0, %v135
    %v137 = vmax.f32 %v136, 0.0
    %vm138 = vcmask 261120
    %v139 = vsel %vm138, %v137, 0.0
    %140 = vadd.xlane.f32.xlu0 %v139
    %v141 = vpop.xlane.xlu0 %140
    %v142 = vmul.f32 %v75, %v75
    %v143 = vsel %vm138, %v142, 0.0
    %144 = vadd.xlane.f32.xlu0 %v143
    %v145 = vpop.xlane.xlu0 %144
    %s146 = sadd.s32 0, 0
    %s147 = smul.u32 %s146, 8
    %v148 = vlaneseq
    %v149 = vshrl.u32 %v148, 7
    %v150 = vstv %s147
    %v151 = vadd.s32 %v150, %v149
    %vm152 = vcmp.lt.s32.totalorder %v151, 8
    %v153 = vsel %vm152, %v141, 0.0
    %vm154 = vcmask 7168
    %v155 = vsel %vm154, %v153, 0.0
    %156 = vadd.xlane.f32.xlu0 %v155
    %v157 = vpop.xlane.xlu0 %156
    %v158 = vrot.slane %v157, 4
    %v159 = vadd.f32 %v157, %v158
    %v160 = vrot.slane %v159, 2
    %v161 = vadd.f32 %v159, %v160
    %v162 = vrot.slane %v161, 1
    %v163 = vadd.f32 %v161, %v162
    %s164 = vtos %v163
    %v165 = vsel %vm152, %v145, 0.0
    %v166 = vsel %vm154, %v165, 0.0
    %167 = vadd.xlane.f32.xlu0 %v166
    %v168 = vpop.xlane.xlu0 %167
    %v169 = vrot.slane %v168, 4
    %v170 = vadd.f32 %v168, %v169
    %v171 = vrot.slane %v170, 2
    %v172 = vadd.f32 %v170, %v171
    %v173 = vrot.slane %v172, 1
    %v174 = vadd.f32 %v172, %v173
    %s175 = vtos %v174
    %vm176 = vcmp.eq.s32.totalorder %v78, 0
    %v177 = vstv %s164
    %v178 = vsel %vm176, %v177, 0.0
    %vm179 = vcmp.eq.s32.totalorder %v78, 2
    %v180 = vstv %s175
    %v181 = vsel %vm179, %v180, %v178
    %v182 = vld [vmem:[#allocation2] sm:$0xff]
    %v183 = vadd.f32 %v182, %v181
    %184 = vst [vmem:[#allocation2] sm:$0xff] %v183
    // Predicated region
    $region18: #{tpu_custom_call.1} parent=1 // pred_check
      _
    $region19: #{tpu_custom_call.1} parent=1 // pred_check_branch
      %186 = sbr.rel (0) target = $region21
    $region20: #{tpu_custom_call.1} parent=1 // pred_region
      %s188 = ssub.s32 128, 128
      %189 = vsyncadd [#allocation3], %s188
      %s191 = sshll.u32 [#allocation2], 4
      %s192 = int_to_ptr.vmem [resolvable:$true] %s191
      %194 = dma.vmem_to_hbm [thread:$0]  %s192, 128, %s3, [#allocation3]
    $region21: #{tpu_custom_call.1} parent=1 // pred_fallthru
      _
    // Predicated region
    $region22: #{tpu_custom_call.1} parent=1 // pred_check
      _
    $region23: #{tpu_custom_call.1} parent=1 // pred_check_branch
      %196 = sbr.rel (0) target = $region25
    $region24: #{tpu_custom_call.1} parent=1 // pred_region
      %197 = dma.done [#allocation3], 128
    $region25: #{tpu_custom_call.1} parent=1 // pred_fallthru
      _
    %198 = vsyncpa [#allocation3], 1

</llo_original>
